<compile_context>
chip_gen: v7x
topology: tpu7x:2x2x1
jax: 0.10.0
libtpu: 0.0.40
codegen_flags: <defaults>
</compile_context>

<pallas_src>
from functools import partial

import jax
import jax.numpy as jnp
from jax.experimental import pallas as pl
from jax.experimental.pallas import tpu as pltpu


def _round_up(x, m):
    return ((x + m - 1) // m) * m


def _cdiv(a, b):
    return -(-a // b)


def _pb_mae_kernel(r_ref, rhat_ref, out_ref, acc_ref, *,
                   steps_per_split, tm, rows, need_mask):
    # Grid = (split, reduction step); reduction axis is last.
    k = pl.program_id(1)

    # Zero the vector accumulator at the start of each split's reduction.
    @pl.when(k == 0)
    def _():
        acc_ref[...] = jnp.zeros_like(acc_ref)

    r = r_ref[...].astype(jnp.float32)
    r_hat = rhat_ref[...].astype(jnp.float32)

    abs_err = jnp.abs(r_hat - r)
    # abs_err ** 1.5 == abs_err * sqrt(abs_err) (sqrt goes to the EUP slot).
    under = abs_err * jnp.sqrt(abs_err)
    loss = jnp.where(r_hat < r, under, abs_err)

    if need_mask:
        # Zero out rows past the logical row count (partial edge blocks and
        # clamped extra steps read unspecified data -> mask it away).
        step = pl.program_id(0) * steps_per_split + k
        row_start = step * tm
        row_ids = row_start + jax.lax.broadcasted_iota(jnp.int32, loss.shape, 0)
        loss = jnp.where(row_ids < rows, loss, 0.0)

    # Pure elementwise VPU accumulate -- no per-step cross-lane reduce.
    acc_ref[...] += loss

    # Single reduce per split, on the last step of the reduction axis.
    @pl.when(k == pl.num_programs(1) - 1)
    def _():
        total = jnp.sum(acc_ref[...])
        out_ref[...] = jnp.broadcast_to(total, out_ref.shape).astype(jnp.float32)


def peak_biased_mae(r, r_hat, *, cols=None, max_tile_rows=1024, n_splits=None):
    assert r.shape == r_hat.shape, "r and r_hat must have the same shape"
    n = r.size
    assert n > 0

    # Pick the widest lane-dense column count that divides n (reshape is then
    # a free bitcast); fall back to 128 with a tiny tail pad for ragged n.
    if cols is None:
        cols = next((c for c in (512, 256, 128) if n % c == 0), 128)
    assert cols % 128 == 0

    rows = _cdiv(n, cols)
    pad = rows * cols - n
    rf = r.reshape(-1)
    hf = r_hat.reshape(-1)
    if pad:
        # Zero padding contributes exactly 0 to the loss sum (|0-0| = 0).
        rf = jnp.pad(rf, (0, pad))
        hf = jnp.pad(hf, (0, pad))
    r2 = rf.reshape(rows, cols)
    h2 = hf.reshape(rows, cols)

    # Tile geometry.  A single full-extent row block needs no (8,128) rounding;
    # multi-step tiling uses a multiple-of-8 row tile plus in-kernel masking.
    if rows <= max_tile_rows:
        tm = rows
    else:
        tm = _round_up(max_tile_rows, 8)

    n_steps_needed = _cdiv(rows, tm)
    if n_splits is None:
        n_splits = 2 if n_steps_needed >= 2 else 1   # 2-TC split on v7x
    steps_per_split = _cdiv(n_steps_needed, n_splits)
    n_steps = steps_per_split * n_splits
    need_mask = (rows % tm != 0) or (n_steps != n_steps_needed)
    last_block = n_steps_needed - 1

    def in_map(s, k):
        # Clamp so rounded-up steps never address a fully out-of-bounds block;
        # the in-kernel row mask zeroes their contribution.
        return (jnp.minimum(s * steps_per_split + k, last_block), 0)

    kernel = partial(_pb_mae_kernel, steps_per_split=steps_per_split,
                     tm=tm, rows=rows, need_mask=need_mask)

    partials = pl.pallas_call(
        kernel,
        out_shape=jax.ShapeDtypeStruct((n_splits, 8, 128), jnp.float32),
        grid_spec=pltpu.PrefetchScalarGridSpec(
            num_scalar_prefetch=0,
            grid=(n_splits, steps_per_split),
            in_specs=[
                pl.BlockSpec((tm, cols), in_map),
                pl.BlockSpec((tm, cols), in_map),
            ],
            out_specs=pl.BlockSpec((1, 8, 128), lambda s, k: (s, 0, 0)),
            scratch_shapes=[pltpu.VMEM((tm, cols), jnp.float32)],
        ),
        compiler_params=pltpu.CompilerParams(
            dimension_semantics=("parallel", "arbitrary"),
        ),
    )(r2, h2)

    # Combine per-split partial sums; divide by the TRUE element count.
    return jnp.sum(partials[:, 0, 0]) / jnp.float32(n)


def _reference(r, r_hat):
    abs_err = jnp.abs(r_hat - r)
    loss = jnp.where(r_hat < r, abs_err ** 1.5, abs_err)
    return jnp.mean(loss)


if __name__ == "__main__":
    key = jax.random.PRNGKey(0)
    k1, k2, k3, k4, k5, k6 = jax.random.split(key, 6)

    # Module has no parameters; inputs r (target) and r_hat (prediction).
    shape = (2, 4, 16, 16)  # NCHW
    r = jax.random.normal(k1, shape, dtype=jnp.float32)
    r_hat = jax.random.normal(k2, shape, dtype=jnp.float32)

    out = jax.block_until_ready(peak_biased_mae(r, r_hat))
    ref = _reference(r, r_hat)
    assert jnp.allclose(out, ref, rtol=1e-5, atol=1e-5), (out, ref)

    # Multi-step / two-split reduction path with tiny tiles.
    out2 = jax.block_until_ready(
        peak_biased_mae(r, r_hat, cols=128, max_tile_rows=8))
    assert jnp.allclose(out2, ref, rtol=1e-5, atol=1e-5), (out2, ref)

    # Ragged element count (not a multiple of 128) -> tail padding.
    shape3 = (2, 3, 37, 53)
    r3 = jax.random.normal(k3, shape3, dtype=jnp.float32)
    rhat3 = jax.random.normal(k4, shape3, dtype=jnp.float32)
    ref3 = _reference(r3, rhat3)
    out3 = jax.block_until_ready(peak_biased_mae(r3, rhat3))
    assert jnp.allclose(out3, ref3, rtol=1e-5, atol=1e-5), (out3, ref3)

    # Same ragged input, forced multi-step tiling -> partial edge row blocks
    # handled by the in-kernel row mask.
    out4 = jax.block_until_ready(
        peak_biased_mae(r3, rhat3, cols=128, max_tile_rows=8))
    assert jnp.allclose(out4, ref3, rtol=1e-5, atol=1e-5), (out4, ref3)

    # Odd step count with 2 splits -> exercises the clamped index map.
    r5 = jax.random.normal(k5, (5, 512), dtype=jnp.float32)
    rhat5 = jax.random.normal(k6, (5, 512), dtype=jnp.float32)
    ref5 = _reference(r5, rhat5)
    out5 = jax.block_until_ready(
        peak_biased_mae(r5, rhat5, cols=128, max_tile_rows=8))
    assert jnp.allclose(out5, ref5, rtol=1e-5, atol=1e-5), (out5, ref5)

    print("KERNEL_OK")
</pallas_src>

<mosaic_0001>
module attributes {stable_mosaic.version = 11 : i64} {
  func.func @_pb_mae_kernel(%arg0: i32, %arg1: i32, %arg2: memref<4x512xf32, #tpu.memory_space<vmem>>, %arg3: memref<4x512xf32, #tpu.memory_space<vmem>>, %arg4: memref<1x8x128xf32, #tpu.memory_space<vmem>>, %arg5: memref<4x512xf32, #tpu.memory_space<vmem>>) attributes {dimension_semantics = [#tpu.dimension_semantics<parallel>, #tpu.dimension_semantics<arbitrary>], iteration_bounds = array<i64: 1, 1>, scalar_prefetch = 0 : i64, scratch_operands = 1 : i64, tpu.core_type = #tpu.core_type<tc>, window_params = [{transform_indices = @transform_0, window_bounds = array<i64: 4, 512>}, {transform_indices = @transform_1, window_bounds = array<i64: 4, 512>}, {transform_indices = @transform_2, window_bounds = array<i64: 1, 8, 128>}]} {
    %c0_i32 = arith.constant 0 : i32
    %0 = arith.cmpi eq, %arg1, %c0_i32 : i32
    %1 = arith.extui %0 : i1 to i32
    %c0_i32_0 = arith.constant 0 : i32
    %2 = arith.cmpi ne, %1, %c0_i32_0 : i32
    scf.if %2 {
      %cst = arith.constant 0.000000e+00 : f32
      %17 = vector.broadcast %cst : f32 to vector<4x512xf32>
      %c0_10 = arith.constant 0 : index
      %c0_11 = arith.constant 0 : index
      %18 = vector.load %arg5[%c0_10, %c0_11] : memref<4x512xf32, #tpu.memory_space<vmem>>, vector<4x512xf32>
      tpu.vector_store %arg5[%c0_10, %c0_11], %17 {strides = array<i32>} : memref<4x512xf32, #tpu.memory_space<vmem>>, vector<4x512xf32>,
    } else {
    }
    %c0 = arith.constant 0 : index
    %c0_1 = arith.constant 0 : index
    %3 = vector.load %arg2[%c0, %c0_1] : memref<4x512xf32, #tpu.memory_space<vmem>>, vector<4x512xf32>
    %c0_2 = arith.constant 0 : index
    %c0_3 = arith.constant 0 : index
    %4 = vector.load %arg3[%c0_2, %c0_3] : memref<4x512xf32, #tpu.memory_space<vmem>>, vector<4x512xf32>
    %5 = arith.subf %4, %3 : vector<4x512xf32>
    %6 = math.absf %5 : vector<4x512xf32>
    %7 = math.sqrt %6 : vector<4x512xf32>
    %8 = arith.mulf %6, %7 : vector<4x512xf32>
    %9 = arith.cmpf olt, %4, %3 : vector<4x512xf32>
    %10 = arith.select %9, %8, %6 : vector<4x512xi1>, vector<4x512xf32>
    %c0_4 = arith.constant 0 : index
    %c0_5 = arith.constant 0 : index
    %11 = vector.load %arg5[%c0_4, %c0_5] : memref<4x512xf32, #tpu.memory_space<vmem>>, vector<4x512xf32>
    %12 = arith.addf %11, %10 : vector<4x512xf32>
    %c0_6 = arith.constant 0 : index
    %c0_7 = arith.constant 0 : index
    %13 = vector.load %arg5[%c0_6, %c0_7] : memref<4x512xf32, #tpu.memory_space<vmem>>, vector<4x512xf32>
    tpu.vector_store %arg5[%c0_6, %c0_7], %12 {strides = array<i32>} : memref<4x512xf32, #tpu.memory_space<vmem>>, vector<4x512xf32>,
    %c0_i32_8 = arith.constant 0 : i32
    %14 = arith.cmpi eq, %arg1, %c0_i32_8 : i32
    %15 = arith.extui %14 : i1 to i32
    %c0_i32_9 = arith.constant 0 : i32
    %16 = arith.cmpi ne, %15, %c0_i32_9 : i32
    scf.if %16 {
      %c0_10 = arith.constant 0 : index
      %c0_11 = arith.constant 0 : index
      %17 = vector.load %arg5[%c0_10, %c0_11] : memref<4x512xf32, #tpu.memory_space<vmem>>, vector<4x512xf32>
      %18 = vector.shape_cast %17 : vector<4x512xf32> to vector<1x4x512xf32>
      %cst = arith.constant dense<0.000000e+00> : vector<1xf32>
      %19 = vector.multi_reduction <add>, %18, %cst [1, 2] : vector<1x4x512xf32> to vector<1xf32>
      %20 = vector.shape_cast %19 : vector<1xf32> to vector<1x1x1xf32>
      %21 = vector.extract %20[0, 0, 0] : f32 from vector<1x1x1xf32>
      %22 = vector.broadcast %21 : f32 to vector<1x8x128xf32>
      %c0_12 = arith.constant 0 : index
      %c0_13 = arith.constant 0 : index
      %c0_14 = arith.constant 0 : index
      %23 = vector.load %arg4[%c0_12, %c0_13, %c0_14] : memref<1x8x128xf32, #tpu.memory_space<vmem>>, vector<1x8x128xf32>
      tpu.vector_store %arg4[%c0_12, %c0_13, %c0_14], %22 {strides = array<i32>} : memref<1x8x128xf32, #tpu.memory_space<vmem>>, vector<1x8x128xf32>,
    } else {
    }
    return
  }
  func.func @transform_0(%arg0: i32, %arg1: i32) -> (i32, i32) {
    %c1_i32 = arith.constant 1 : i32
    %0 = arith.muli %arg0, %c1_i32 : i32
    %1 = arith.addi %0, %arg1 : i32
    %c0_i32 = arith.constant 0 : i32
    %2 = arith.minsi %1, %c0_i32 : i32
    %c0_i32_0 = arith.constant 0 : i32
    %c0_i32_1 = arith.constant 0 : i32
    return %2, %c0_i32_0 : i32, i32
  }
  func.func @transform_1(%arg0: i32, %arg1: i32) -> (i32, i32) {
    %c1_i32 = arith.constant 1 : i32
    %0 = arith.muli %arg0, %c1_i32 : i32
    %1 = arith.addi %0, %arg1 : i32
    %c0_i32 = arith.constant 0 : i32
    %2 = arith.minsi %1, %c0_i32 : i32
    %c0_i32_0 = arith.constant 0 : i32
    %c0_i32_1 = arith.constant 0 : i32
    return %2, %c0_i32_0 : i32, i32
  }
  func.func @transform_2(%arg0: i32, %arg1: i32) -> (i32, i32, i32) {
    %c0_i32 = arith.constant 0 : i32
    %c0_i32_0 = arith.constant 0 : i32
    %c0_i32_1 = arith.constant 0 : i32
    return %arg0, %c0_i32, %c0_i32_0 : i32, i32, i32
  }
}

</mosaic_0001>

<llo_original>
// kernel: tpu_custom_call.1
$region0: #{tpu_custom_call.1}
  #allocation0 [shape = 'u32[]', space=smem, size = 0x4, offset = 0x4, fixed_abs, tag = 'smem constant byte address 0x4 - core index']
  #allocation1 [shape = 'u32[144,128]{1,0:T(1,128)}', space=vmem, size = 0x12000, scoped, tag = 'internal scratch']
  #allocation2 [shape = 'f32[4,512]{1,0:T(4,128)}', space=vmem, size = 0x2000, scoped, tag = 'scratch operand']
  %s0 = inlined_call_operand.hbm [shape: f32[4,512], index: 0, kind: input, shape index: {}]
  %s1 = inlined_call_operand.hbm [shape: f32[4,512], index: 1, kind: input, shape index: {}]
  %s2 = inlined_call_operand.hbm [shape: f32[1,8,128], index: 2, kind: output, shape index: {}]
  %s3 = sld [smem:[#allocation0]]
  $region34: #{tpu_custom_call.1} parent=0
    _
  %s5 = ssub.s32 1, %s3
  %s6 = scalar_select 0, %s5, %s3
  $region1: #{tpu_custom_call.1} parent=0
    #allocation3 [shape = 'u8[8192]{0}', space=vmem, size = 0x2000, scoped, tag = 'input window, operand 0, single buffered']
    #allocation4 [shape = 's32[1]{0}', space=sflag, size = 0x4, scoped, tag = 'scoped memory for tpu_custom_call.1']
    #allocation5 [shape = 's32[1]{0}', space=sflag, size = 0x4, scoped, tag = 'scoped memory for tpu_custom_call.1']
    #allocation6 [shape = 'u8[8192]{0}', space=vmem, size = 0x2000, scoped, tag = 'input window, operand 1, single buffered']
    #allocation7 [shape = 's32[1]{0}', space=sflag, size = 0x4, scoped, tag = 'scoped memory for tpu_custom_call.1']
    #allocation8 [shape = 'u8[4096]{0}', space=vmem, size = 0x1000, scoped, tag = 'output window, operand 0, single buffered']
    %7 = vsyncpa [#allocation4], 0
    %8 = vsyncpa [#allocation7], 0
    %9 = vsyncpa [#allocation5], 0
    // Predicated region
    $region2: #{tpu_custom_call.1} parent=1 // pred_check
      _
    $region3: #{tpu_custom_call.1} parent=1 // pred_check_branch
      %11 = sbr.rel (0) target = $region5
    $region4: #{tpu_custom_call.1} parent=1 // pred_region
      %s12 = sadd.s32 0, 0
      %p13 = scmp.lt.s32.totalorder %s12, 0
      %s14 = scalar_select %p13, %s12, 0
      %s16 = ssub.s32 256, 256
      %17 = vsyncadd [#allocation4], %s16
      %s18 = smul.addr %s14, 4
      %s19 = smul.addr %s18, 64
      %s20 = scalar_lea.hbm %s0, %s19
      %s22 = sshll.u32 [#allocation3], 4
      %s23 = int_to_ptr.vmem [resolvable:$true] %s22
      %25 = dma.hbm_to_vmem [thread:$0]  %s20, 256, %s23, [#allocation4]
    $region5: #{tpu_custom_call.1} parent=1 // pred_fallthru
      _
    // Predicated region
    $region6: #{tpu_custom_call.1} parent=1 // pred_check
      _
    $region7: #{tpu_custom_call.1} parent=1 // pred_check_branch
      %27 = sbr.rel (0) target = $region9
    $region8: #{tpu_custom_call.1} parent=1 // pred_region
      %s28 = sadd.s32 0, 0
      %p29 = scmp.lt.s32.totalorder %s28, 0
      %s30 = scalar_select %p29, %s28, 0
      %s32 = ssub.s32 256, 256
      %33 = vsyncadd [#allocation7], %s32
      %s34 = smul.addr %s30, 4
      %s35 = smul.addr %s34, 64
      %s36 = scalar_lea.hbm %s1, %s35
      %s38 = sshll.u32 [#allocation6], 4
      %s39 = int_to_ptr.vmem [resolvable:$true] %s38
      %41 = dma.hbm_to_vmem [thread:$0]  %s36, 256, %s39, [#allocation7]
    $region9: #{tpu_custom_call.1} parent=1 // pred_fallthru
      _
    // Predicated region
    $region10: #{tpu_custom_call.1} parent=1 // pred_check
      _
    $region11: #{tpu_custom_call.1} parent=1 // pred_check_branch
      %43 = sbr.rel (0) target = $region13
    $region12: #{tpu_custom_call.1} parent=1 // pred_region
      %44 = dma.done [#allocation4], 256
    $region13: #{tpu_custom_call.1} parent=1 // pred_fallthru
      _
    // Predicated region
    $region14: #{tpu_custom_call.1} parent=1 // pred_check
      _
    $region15: #{tpu_custom_call.1} parent=1 // pred_check_branch
      %46 = sbr.rel (0) target = $region17
    $region16: #{tpu_custom_call.1} parent=1 // pred_region
      %47 = dma.done [#allocation7], 256
    $region17: #{tpu_custom_call.1} parent=1 // pred_fallthru
      _
    %s48 = sadd.s32 0, 0
    %p49 = scmp.lt.s32.totalorder %s48, 0
    %s50 = scalar_select %p49, %s48, 0
    %s51 = sadd.s32 0, 0
    %p52 = scmp.lt.s32.totalorder %s51, 0
    %s53 = scalar_select %p52, %s51, 0
    %p54 = scmp.eq.s32.totalorder 0, 0
    // Predicated region
    $region18: #{tpu_custom_call.1} parent=1 // pred_check
      %p55 = pneg %p54
    $region19: #{tpu_custom_call.1} parent=1 // pred_check_branch
      %57 = sbr.rel (%p55) target = $region21
    $region20: #{tpu_custom_call.1} parent=1 // pred_region
      %58 = vst [vmem:[#allocation2] sm:$0xff] 0.0
      %59 = vst [vmem:[#allocation2 + $0x8] sm:$0xff] 0.0
    $region21: #{tpu_custom_call.1} parent=1 // pred_fallthru
      _
    %v60 = vld [vmem:[#allocation3] sm:$0xff]
    %v61 = vld [vmem:[#allocation3 + $0x8] sm:$0xff]
    %v62 = vld [vmem:[#allocation6] sm:$0xff]
    %v63 = vld [vmem:[#allocation6 + $0x8] sm:$0xff]
    %v64 = vsub.f32 %v62, %v60
    %v65 = vsub.f32 %v63, %v61
    %v66 = vand.u32 2147483647, %v64
    %v67 = vand.u32 2147483647, %v65
    %v68 = vrsqrt.pop %v66
    %v69 = vmul.f32 %v66, %v68
    %vm70 = vcmp.eq.f32.partialorder %v66, inf
    %v71 = vsel %vm70, %v66, %v69
    %vm72 = vcmp.eq.f32.partialorder %v66, 0.0
    %v73 = vand.u32 %v66, 2147483648
    %v74 = vsel %vm72, %v73, %v71
    %v75 = vrsqrt.pop %v67
    %v76 = vmul.f32 %v67, %v75
    %vm77 = vcmp.eq.f32.partialorder %v67, inf
    %v78 = vsel %vm77, %v67, %v76
    %vm79 = vcmp.eq.f32.partialorder %v67, 0.0
    %v80 = vand.u32 %v67, 2147483648
    %v81 = vsel %vm79, %v80, %v78
    %v82 = vmul.f32 %v66, %v74
    %v83 = vmul.f32 %v67, %v81
    %vm84 = vcmp.lt.f32.partialorder %v62, %v60
    %vm85 = vcmp.lt.f32.partialorder %v63, %v61
    %v86 = vsel %vm84, %v82, %v66
    %v87 = vsel %vm85, %v83, %v67
    %v88 = vld [vmem:[#allocation2] sm:$0xff]
    %v89 = vld [vmem:[#allocation2 + $0x8] sm:$0xff]
    %v90 = vadd.f32 %v88, %v86
    %v91 = vadd.f32 %v89, %v87
    %92 = vst [vmem:[#allocation2] sm:$0xff] %v90
    %93 = vst [vmem:[#allocation2 + $0x8] sm:$0xff] %v91
    // Predicated region
    $region22: #{tpu_custom_call.1} parent=1 // pred_check
      %p94 = pneg %p54
    $region23: #{tpu_custom_call.1} parent=1 // pred_check_branch
      %96 = sbr.rel (%p94) target = $region25
    $region24: #{tpu_custom_call.1} parent=1 // pred_region
      %v97 = vld [vmem:[#allocation2] sm:$0xff]
      %v98 = vld [vmem:[#allocation2 + $0x8] sm:$0xff]
      %v101 = vcombine.high %v97, %v97
      %v102 = vcombine.high %v98, %v98
      %vm105 = vcmask 1043456
      %v106 = vsel %vm105, %v97, 0.0
      %v107 = vsel %vm105, %v101, 0.0
      %v108 = vadd.f32 %v106, %v107
      %v109 = vsel %vm105, %v98, 0.0
      %v110 = vadd.f32 %v108, %v109
      %v111 = vsel %vm105, %v102, 0.0
      %v112 = vadd.f32 %v110, %v111
      %113 = vadd.xlane.f32.xlu0 %v112
      %v114 = vpop.xlane.xlu0 %113
      %v115 = vrot.slane %v114, 4
      %v116 = vadd.f32 %v114, %v115
      %v117 = vrot.slane %v116, 2
      %v118 = vadd.f32 %v116, %v117
      %v119 = vrot.slane %v118, 1
      %v120 = vadd.f32 %v118, %v119
      %s121 = vtos %v120
      %v122 = vstv %s121
      %123 = vst [vmem:[#allocation8] sm:$0xff] %v122
    $region25: #{tpu_custom_call.1} parent=1 // pred_fallthru
      _
    // Predicated region
    $region26: #{tpu_custom_call.1} parent=1 // pred_check
      _
    $region27: #{tpu_custom_call.1} parent=1 // pred_check_branch
      %125 = sbr.rel (0) target = $region29
    $region28: #{tpu_custom_call.1} parent=1 // pred_region
      %s127 = ssub.s32 128, 128
      %128 = vsyncadd [#allocation5], %s127
      %s130 = sshll.u32 [#allocation8], 4
      %s131 = int_to_ptr.vmem [resolvable:$true] %s130
      %133 = dma.vmem_to_hbm [thread:$0]  %s131, 128, %s2, [#allocation5]
    $region29: #{tpu_custom_call.1} parent=1 // pred_fallthru
      _
    // Predicated region
    $region30: #{tpu_custom_call.1} parent=1 // pred_check
      _
    $region31: #{tpu_custom_call.1} parent=1 // pred_check_branch
      %135 = sbr.rel (0) target = $region33
    $region32: #{tpu_custom_call.1} parent=1 // pred_region
      %136 = dma.done [#allocation5], 128
    $region33: #{tpu_custom_call.1} parent=1 // pred_fallthru
      _
    %137 = vsyncpa [#allocation4], 1
    %138 = vsyncpa [#allocation7], 1
    %139 = vsyncpa [#allocation5], 1

</llo_original>
